<compile_context>
chip_gen: v7x
topology: tpu7x:2x2x1
jax: 0.10.0
libtpu: 0.0.40
codegen_flags: <defaults>
</compile_context>

<pallas_src>
import jax
import jax.numpy as jnp
from jax.experimental import pallas as pl
from jax.experimental.pallas import tpu as pltpu


def _ssdh_loss_kernel(h_ref, s_ref, out_ref, acc_ref):
    """Accumulate |S| * (H - S)^2 into a vreg-shaped partial-sum buffer.

    Grid is (P, num_steps): axis 0 is "parallel" (independent partial sums,
    one output slab per p), axis 1 is the "arbitrary" reduction over row
    blocks. acc_ref is an (8, D) VMEM scratch accumulator; the full
    cross-lane reduction is deferred to the wrapper.
    """
    step = pl.program_id(1)

    @pl.when(step == 0)
    def _():
        acc_ref[...] = jnp.zeros_like(acc_ref)

    h = h_ref[...]
    s = s_ref[...]
    if h.dtype != jnp.float32:
        h = h.astype(jnp.float32)
    if s.dtype != jnp.float32:
        s = s.astype(jnp.float32)

    diff = h - s
    contrib = jnp.abs(s) * (diff * diff)            # (tile_rows, D)
    tr, d = contrib.shape
    # Fold groups of 8 sublanes with plain VPU adds; lane axis untouched
    # (no XLU work in the hot loop).
    acc_ref[...] += contrib.reshape(tr // 8, 8, d).sum(axis=0)

    @pl.when(step == pl.num_programs(1) - 1)
    def _():
        out_ref[...] = acc_ref[...][None, :, :]     # (1, 8, D) lane-dense store


def ssdh_loss(H, S, *, target_block_bytes=2 << 20, max_tile_rows=1024):
    assert H.shape == S.shape, "H and S must have the same shape"
    assert H.ndim == 2, "expected 2-D (batch, hash_dim) inputs"
    n = H.shape[0]
    M, D = H.shape

    itemsize = jnp.dtype(H.dtype).itemsize
    # Sublane packing: f32 -> 8-row tiles, bf16 -> 16, 8-bit -> 32.
    row_align = 8 * max(1, 4 // itemsize)

    def _round_up(x, m):
        return (x + m - 1) // m * m

    # VMEM-budget-driven tile size (2 inputs x 2 pipeline buffers per block).
    row_bytes = max(D * itemsize, 1)
    tile_rows = max(row_align, target_block_bytes // row_bytes)
    tile_rows = min(tile_rows, max_tile_rows)
    tile_rows = (tile_rows // row_align) * row_align
    m_aligned = _round_up(M, row_align)
    tile_rows = min(tile_rows, m_aligned)

    total_blocks = -(-m_aligned // tile_rows)

    # Leading "parallel" axis: lets v7x megacore shard row blocks across its
    # two TensorCores; costs nothing on single-TC v5e/v6e.
    num_cores = 2 if total_blocks >= 2 else 1
    num_steps = -(-total_blocks // num_cores)
    m_padded = num_cores * num_steps * tile_rows

    if m_padded != M:
        pad = ((0, m_padded - M), (0, 0))
        # Zero-padding S makes padded rows contribute exactly 0 to the sum.
        H = jnp.pad(H, pad)
        S = jnp.pad(S, pad)

    flops = 4 * m_padded * D
    bytes_accessed = 2 * m_padded * D * itemsize + num_cores * 8 * D * 4

    partials = pl.pallas_call(
        _ssdh_loss_kernel,
        out_shape=jax.ShapeDtypeStruct((num_cores, 8, D), jnp.float32),
        grid_spec=pltpu.PrefetchScalarGridSpec(
            num_scalar_prefetch=0,
            grid=(num_cores, num_steps),
            in_specs=[
                pl.BlockSpec((tile_rows, D),
                             lambda p, i: (p * num_steps + i, 0)),
                pl.BlockSpec((tile_rows, D),
                             lambda p, i: (p * num_steps + i, 0)),
            ],
            out_specs=pl.BlockSpec((1, 8, D), lambda p, i: (p, 0, 0)),
            scratch_shapes=[pltpu.VMEM((8, D), jnp.float32)],
        ),
        compiler_params=pltpu.CompilerParams(
            dimension_semantics=("parallel", "arbitrary"),
        ),
        cost_estimate=pl.CostEstimate(
            flops=flops, transcendentals=0, bytes_accessed=bytes_accessed),
    )(H, S)

    # Single final cross-lane/sublane reduction on the tiny partial-sum slab,
    # plus the static 1 / N**2 normalization.
    return partials.sum() / jnp.float32(n * n)


if __name__ == "__main__":
    key = jax.random.PRNGKey(0)
    k1, k2 = jax.random.split(key)

    # Small shape consistent with the module: H is the network hash output
    # (N, D); S is the {-1, +1} similarity target of the same shape.
    N, D = 16, 128
    H = jax.random.normal(k1, (N, D), dtype=jnp.float32)
    S = jnp.sign(jax.random.normal(k2, (N, D), dtype=jnp.float32))

    out = jax.block_until_ready(ssdh_loss(H, S))
    ref = (jnp.abs(S) * (H - S) ** 2).sum() / (N ** 2)
    assert jnp.allclose(out, ref, rtol=1e-5, atol=1e-5), (out, ref)

    # Secondary check: exercises zero-padding, multi-block reduction and the
    # 2-way "parallel" partial-sum path.
    k3, k4 = jax.random.split(k1)
    N2, D2 = 2000, 128
    H2 = jax.random.normal(k3, (N2, D2), dtype=jnp.float32)
    S2 = jnp.sign(jax.random.normal(k4, (N2, D2), dtype=jnp.float32))
    out2 = jax.block_until_ready(ssdh_loss(H2, S2))
    ref2 = (jnp.abs(S2) * (H2 - S2) ** 2).sum() / (N2 ** 2)
    assert jnp.allclose(out2, ref2, rtol=1e-5, atol=1e-5), (out2, ref2)

    print("KERNEL_OK")
</pallas_src>

<mosaic_0001>
module attributes {stable_mosaic.version = 11 : i64} {
  func.func @_ssdh_loss_kernel(%arg0: i32, %arg1: i32, %arg2: memref<16x128xf32, #tpu.memory_space<vmem>>, %arg3: memref<16x128xf32, #tpu.memory_space<vmem>>, %arg4: memref<1x8x128xf32, #tpu.memory_space<vmem>>, %arg5: memref<8x128xf32, #tpu.memory_space<vmem>>) attributes {dimension_semantics = [#tpu.dimension_semantics<parallel>, #tpu.dimension_semantics<arbitrary>], iteration_bounds = array<i64: 1, 1>, scalar_prefetch = 0 : i64, scratch_operands = 1 : i64, tpu.core_type = #tpu.core_type<tc>, window_params = [{transform_indices = @transform_0, window_bounds = array<i64: 16, 128>}, {transform_indices = @transform_1, window_bounds = array<i64: 16, 128>}, {transform_indices = @transform_2, window_bounds = array<i64: 1, 8, 128>}]} {
    %c0_i32 = arith.constant 0 : i32
    %0 = arith.cmpi eq, %arg1, %c0_i32 : i32
    %1 = arith.extui %0 : i1 to i32
    %c0_i32_0 = arith.constant 0 : i32
    %2 = arith.cmpi ne, %1, %c0_i32_0 : i32
    scf.if %2 {
      %cst_10 = arith.constant 0.000000e+00 : f32
      %17 = vector.broadcast %cst_10 : f32 to vector<8x128xf32>
      %c0_11 = arith.constant 0 : index
      %c0_12 = arith.constant 0 : index
      %18 = vector.load %arg5[%c0_11, %c0_12] : memref<8x128xf32, #tpu.memory_space<vmem>>, vector<8x128xf32>
      tpu.vector_store %arg5[%c0_11, %c0_12], %17 {strides = array<i32>} : memref<8x128xf32, #tpu.memory_space<vmem>>, vector<8x128xf32>,
    } else {
    }
    %c0 = arith.constant 0 : index
    %c0_1 = arith.constant 0 : index
    %3 = vector.load %arg2[%c0, %c0_1] : memref<16x128xf32, #tpu.memory_space<vmem>>, vector<16x128xf32>
    %c0_2 = arith.constant 0 : index
    %c0_3 = arith.constant 0 : index
    %4 = vector.load %arg3[%c0_2, %c0_3] : memref<16x128xf32, #tpu.memory_space<vmem>>, vector<16x128xf32>
    %5 = arith.subf %3, %4 : vector<16x128xf32>
    %6 = math.absf %4 : vector<16x128xf32>
    %7 = arith.mulf %5, %5 : vector<16x128xf32>
    %8 = arith.mulf %6, %7 : vector<16x128xf32>
    %c0_4 = arith.constant 0 : index
    %c0_5 = arith.constant 0 : index
    %9 = vector.load %arg5[%c0_4, %c0_5] : memref<8x128xf32, #tpu.memory_space<vmem>>, vector<8x128xf32>
    %10 = vector.shape_cast %8 : vector<16x128xf32> to vector<2x8x128xf32>
    %cst = arith.constant dense<0.000000e+00> : vector<8x128xf32>
    %11 = vector.multi_reduction <add>, %10, %cst [0] : vector<2x8x128xf32> to vector<8x128xf32>
    %12 = arith.addf %9, %11 : vector<8x128xf32>
    %c0_6 = arith.constant 0 : index
    %c0_7 = arith.constant 0 : index
    %13 = vector.load %arg5[%c0_6, %c0_7] : memref<8x128xf32, #tpu.memory_space<vmem>>, vector<8x128xf32>
    tpu.vector_store %arg5[%c0_6, %c0_7], %12 {strides = array<i32>} : memref<8x128xf32, #tpu.memory_space<vmem>>, vector<8x128xf32>,
    %c0_i32_8 = arith.constant 0 : i32
    %14 = arith.cmpi eq, %arg1, %c0_i32_8 : i32
    %15 = arith.extui %14 : i1 to i32
    %c0_i32_9 = arith.constant 0 : i32
    %16 = arith.cmpi ne, %15, %c0_i32_9 : i32
    scf.if %16 {
      %c0_10 = arith.constant 0 : index
      %c0_11 = arith.constant 0 : index
      %17 = vector.load %arg5[%c0_10, %c0_11] : memref<8x128xf32, #tpu.memory_space<vmem>>, vector<8x128xf32>
      %18 = vector.shape_cast %17 : vector<8x128xf32> to vector<1x8x128xf32>
      %c0_12 = arith.constant 0 : index
      %c0_13 = arith.constant 0 : index
      %c0_14 = arith.constant 0 : index
      %19 = vector.load %arg4[%c0_12, %c0_13, %c0_14] : memref<1x8x128xf32, #tpu.memory_space<vmem>>, vector<1x8x128xf32>
      tpu.vector_store %arg4[%c0_12, %c0_13, %c0_14], %18 {strides = array<i32>} : memref<1x8x128xf32, #tpu.memory_space<vmem>>, vector<1x8x128xf32>,
    } else {
    }
    return
  }
  func.func @transform_0(%arg0: i32, %arg1: i32) -> (i32, i32) {
    %c1_i32 = arith.constant 1 : i32
    %0 = arith.muli %arg0, %c1_i32 : i32
    %1 = arith.addi %0, %arg1 : i32
    %c0_i32 = arith.constant 0 : i32
    %c0_i32_0 = arith.constant 0 : i32
    return %1, %c0_i32 : i32, i32
  }
  func.func @transform_1(%arg0: i32, %arg1: i32) -> (i32, i32) {
    %c1_i32 = arith.constant 1 : i32
    %0 = arith.muli %arg0, %c1_i32 : i32
    %1 = arith.addi %0, %arg1 : i32
    %c0_i32 = arith.constant 0 : i32
    %c0_i32_0 = arith.constant 0 : i32
    return %1, %c0_i32 : i32, i32
  }
  func.func @transform_2(%arg0: i32, %arg1: i32) -> (i32, i32, i32) {
    %c0_i32 = arith.constant 0 : i32
    %c0_i32_0 = arith.constant 0 : i32
    %c0_i32_1 = arith.constant 0 : i32
    return %arg0, %c0_i32, %c0_i32_0 : i32, i32, i32
  }
}

</mosaic_0001>

<llo_original>
// kernel: tpu_custom_call.1
$region0: #{tpu_custom_call.1}
  #allocation0 [shape = 'u32[]', space=smem, size = 0x4, offset = 0x4, fixed_abs, tag = 'smem constant byte address 0x4 - core index']
  #allocation1 [shape = 'u32[144,128]{1,0:T(1,128)}', space=vmem, size = 0x12000, scoped, tag = 'internal scratch']
  #allocation2 [shape = 'f32[8,128]{1,0:T(8,128)}', space=vmem, size = 0x1000, scoped, tag = 'scratch operand']
  %s0 = inlined_call_operand.hbm [shape: f32[16,128], index: 0, kind: input, shape index: {}]
  %s1 = inlined_call_operand.hbm [shape: f32[16,128], index: 1, kind: input, shape index: {}]
  %s2 = inlined_call_operand.hbm [shape: f32[1,8,128], index: 2, kind: output, shape index: {}]
  %s3 = sld [smem:[#allocation0]]
  $region34: #{tpu_custom_call.1} parent=0
    _
  %s5 = ssub.s32 1, %s3
  %s6 = scalar_select 0, %s5, %s3
  $region1: #{tpu_custom_call.1} parent=0
    #allocation3 [shape = 'u8[8192]{0}', space=vmem, size = 0x2000, scoped, tag = 'input window, operand 0, single buffered']
    #allocation4 [shape = 's32[1]{0}', space=sflag, size = 0x4, scoped, tag = 'scoped memory for tpu_custom_call.1']
    #allocation5 [shape = 's32[1]{0}', space=sflag, size = 0x4, scoped, tag = 'scoped memory for tpu_custom_call.1']
    #allocation6 [shape = 'u8[8192]{0}', space=vmem, size = 0x2000, scoped, tag = 'input window, operand 1, single buffered']
    #allocation7 [shape = 's32[1]{0}', space=sflag, size = 0x4, scoped, tag = 'scoped memory for tpu_custom_call.1']
    #allocation8 [shape = 'u8[4096]{0}', space=vmem, size = 0x1000, scoped, tag = 'output window, operand 0, single buffered']
    %7 = vsyncpa [#allocation4], 0
    %8 = vsyncpa [#allocation7], 0
    %9 = vsyncpa [#allocation5], 0
    // Predicated region
    $region2: #{tpu_custom_call.1} parent=1 // pred_check
      _
    $region3: #{tpu_custom_call.1} parent=1 // pred_check_branch
      %11 = sbr.rel (0) target = $region5
    $region4: #{tpu_custom_call.1} parent=1 // pred_region
      %s12 = sadd.s32 0, 0
      %s13 = smul.u32 2, %s12
      %s15 = ssub.s32 256, 256
      %16 = vsyncadd [#allocation4], %s15
      %s17 = smul.addr %s13, 128
      %s18 = scalar_lea.hbm %s0, %s17
      %s19 = sshll.u32 [#allocation3], 4
      %s20 = int_to_ptr.vmem [resolvable:$true] %s19
      %25 = dma.hbm_to_vmem [thread:$0]  %s18, 256, %s20, [#allocation4], 128, 128, 8
    $region5: #{tpu_custom_call.1} parent=1 // pred_fallthru
      _
    // Predicated region
    $region6: #{tpu_custom_call.1} parent=1 // pred_check
      _
    $region7: #{tpu_custom_call.1} parent=1 // pred_check_branch
      %27 = sbr.rel (0) target = $region9
    $region8: #{tpu_custom_call.1} parent=1 // pred_region
      %s28 = sadd.s32 0, 0
      %s29 = smul.u32 2, %s28
      %s31 = ssub.s32 256, 256
      %32 = vsyncadd [#allocation7], %s31
      %s33 = smul.addr %s29, 128
      %s34 = scalar_lea.hbm %s1, %s33
      %s35 = sshll.u32 [#allocation6], 4
      %s36 = int_to_ptr.vmem [resolvable:$true] %s35
      %41 = dma.hbm_to_vmem [thread:$0]  %s34, 256, %s36, [#allocation7], 128, 128, 8
    $region9: #{tpu_custom_call.1} parent=1 // pred_fallthru
      _
    // Predicated region
    $region10: #{tpu_custom_call.1} parent=1 // pred_check
      _
    $region11: #{tpu_custom_call.1} parent=1 // pred_check_branch
      %43 = sbr.rel (0) target = $region13
    $region12: #{tpu_custom_call.1} parent=1 // pred_region
      %44 = dma.done [#allocation4], 256
    $region13: #{tpu_custom_call.1} parent=1 // pred_fallthru
      _
    // Predicated region
    $region14: #{tpu_custom_call.1} parent=1 // pred_check
      _
    $region15: #{tpu_custom_call.1} parent=1 // pred_check_branch
      %46 = sbr.rel (0) target = $region17
    $region16: #{tpu_custom_call.1} parent=1 // pred_region
      %47 = dma.done [#allocation7], 256
    $region17: #{tpu_custom_call.1} parent=1 // pred_fallthru
      _
    %s48 = sadd.s32 0, 0
    %s49 = smul.u32 2, %s48
    %s50 = sadd.s32 0, 0
    %s51 = smul.u32 2, %s50
    %p52 = scmp.eq.s32.totalorder 0, 0
    // Predicated region
    $region18: #{tpu_custom_call.1} parent=1 // pred_check
      %p53 = pneg %p52
    $region19: #{tpu_custom_call.1} parent=1 // pred_check_branch
      %55 = sbr.rel (%p53) target = $region21
    $region20: #{tpu_custom_call.1} parent=1 // pred_region
      %56 = vst [vmem:[#allocation2] sm:$0xff] 0.0
    $region21: #{tpu_custom_call.1} parent=1 // pred_fallthru
      _
    %v57 = vld [vmem:[#allocation3] sm:$0xff]
    %v58 = vld [vmem:[#allocation3 + $0x8] sm:$0xff]
    %v59 = vld [vmem:[#allocation6] sm:$0xff]
    %v60 = vld [vmem:[#allocation6 + $0x8] sm:$0xff]
    %v61 = vsub.f32 %v57, %v59
    %v62 = vsub.f32 %v58, %v60
    %v63 = vand.u32 2147483647, %v59
    %v64 = vand.u32 2147483647, %v60
    %v65 = vmul.f32 %v61, %v61
    %v66 = vmul.f32 %v62, %v62
    %v67 = vmul.f32 %v63, %v65
    %v68 = vmul.f32 %v64, %v66
    %v69 = vld [vmem:[#allocation2] sm:$0xff]
    %v70 = vadd.f32 %v67, %v68
    %v71 = vadd.f32 %v69, %v70
    %72 = vst [vmem:[#allocation2] sm:$0xff] %v71
    // Predicated region
    $region22: #{tpu_custom_call.1} parent=1 // pred_check
      %p73 = pneg %p52
    $region23: #{tpu_custom_call.1} parent=1 // pred_check_branch
      %75 = sbr.rel (%p73) target = $region25
    $region24: #{tpu_custom_call.1} parent=1 // pred_region
      %v76 = vld [vmem:[#allocation2] sm:$0xff]
      %77 = vst [vmem:[#allocation8] sm:$0xff] %v76
    $region25: #{tpu_custom_call.1} parent=1 // pred_fallthru
      _
    // Predicated region
    $region26: #{tpu_custom_call.1} parent=1 // pred_check
      _
    $region27: #{tpu_custom_call.1} parent=1 // pred_check_branch
      %79 = sbr.rel (0) target = $region29
    $region28: #{tpu_custom_call.1} parent=1 // pred_region
      %s81 = ssub.s32 128, 128
      %82 = vsyncadd [#allocation5], %s81
      %s84 = sshll.u32 [#allocation8], 4
      %s85 = int_to_ptr.vmem [resolvable:$true] %s84
      %87 = dma.vmem_to_hbm [thread:$0]  %s85, 128, %s2, [#allocation5]
    $region29: #{tpu_custom_call.1} parent=1 // pred_fallthru
      _
    // Predicated region
    $region30: #{tpu_custom_call.1} parent=1 // pred_check
      _
    $region31: #{tpu_custom_call.1} parent=1 // pred_check_branch
      %89 = sbr.rel (0) target = $region33
    $region32: #{tpu_custom_call.1} parent=1 // pred_region
      %90 = dma.done [#allocation5], 128
    $region33: #{tpu_custom_call.1} parent=1 // pred_fallthru
      _
    %91 = vsyncpa [#allocation4], 1
    %92 = vsyncpa [#allocation7], 1
    %93 = vsyncpa [#allocation5], 1

</llo_original>
